<compile_context>
chip_gen: v6e
topology: v6e:2x2x1
jax: 0.10.0
libtpu: 0.0.40
codegen_flags: <defaults>
</compile_context>

<pallas_src>
import jax
import jax.numpy as jnp
from jax.experimental import pallas as pl
from jax.experimental.pallas import tpu as pltpu


def _patch_expansion_kernel(x_ref, w_ref, bias_ref, o_ref):
    # x_ref:    (1, TN, C)    one token tile of one batch element
    # w_ref:    (C, Mout)     bf16; LayerNorm gamma folded in (optionally lane-padded)
    # bias_ref: (1, Mout)     f32;  beta @ W + conv bias
    # o_ref:    (1, TN, Mout) bf16 (or x.dtype if x is already bf16)
    x = x_ref[0].astype(jnp.float32)                        # (TN, C)

    # Single-pass LayerNorm statistics: E[x^2] - E[x]^2 in f32. Both reductions are
    # independent (shorter XLU chain, no (TN, C) centered temporary); eps matches 1e-5.
    inv_c = 1.0 / x.shape[-1]
    mean = jnp.sum(x, axis=-1, keepdims=True) * inv_c
    mean_sq = jnp.sum(x * x, axis=-1, keepdims=True) * inv_c
    var = jnp.maximum(mean_sq - mean * mean, 0.0)
    x_ln = (x - mean) * jax.lax.rsqrt(var + 1e-5)           # (TN, C)

    # bf16 MXU matmul with f32 accumulation (= ConvTranspose2d, kernel == stride == patch).
    y = jnp.dot(x_ln.astype(jnp.bfloat16), w_ref[...],
                preferred_element_type=jnp.float32)         # (TN, Mout)
    o_ref[0] = (y + bias_ref[...]).astype(o_ref.dtype)


def _round_up(x, m):
    return -(-x // m) * m


def _choose_token_tile(n, sublane, cap):
    """Return (TN, N_pad): TN is a multiple of `sublane` (MXU-aligned when possible),
    <= cap, and exactly divides the padded token count N_pad (>= n)."""
    cap = max(cap, sublane)
    n_pad = _round_up(n, sublane)
    if n_pad <= cap:
        return n_pad, n_pad
    # Prefer an MXU-aligned divisor of n_pad that is at least half the cap.
    for align in (256, 128, sublane):
        if cap < align:
            continue
        t = cap - cap % align
        while t >= max(align, cap // 2):
            if n_pad % t == 0:
                return t, n_pad
            t -= align
    # No good divisor: take an aligned cap and pad the token axis up to a multiple of it.
    for align in (256, 128, sublane):
        if cap >= align:
            tn = cap - cap % align
            return tn, _round_up(n_pad, tn)
    return sublane, _round_up(n_pad, sublane)


def patch_expansion(x, gamma, beta, w_conv, b_conv, patch_size, out_chans, img_size_in):
    """x: (B, N, C); w_conv: (C, out_chans, ph, pw); b_conv: (out_chans,).

    Returns (B, out_chans, H, W) matching PyTorch's NCHW output, in x.dtype.
    """
    B, N, C = x.shape
    in_dtype = x.dtype
    ph, pw = patch_size
    hg = img_size_in[0] // ph
    wg = img_size_in[1] // pw
    assert N == hg * wg
    M = out_chans * ph * pw

    # Kernel output dtype: bf16 halves the output writeback and the transpose read;
    # final result is cast back to the input dtype at the very end.
    out_dtype = jnp.bfloat16 if in_dtype == jnp.float32 else in_dtype

    # Lane padding only when the waste is small (<= 12.5%). For small M (e.g. 64),
    # masked stores beat doubling output HBM traffic in a mem-bound kernel.
    m_lane = _round_up(M, 128)
    Mout = m_lane if (m_lane - M) * 8 <= M else M

    # Flatten ConvTranspose2d weight (C, O, kH, kW) -> (C, M); bias[o] repeats per tap.
    w_flat = w_conv.reshape(C, M).astype(jnp.float32)
    bias_flat = jnp.repeat(b_conv.astype(jnp.float32), ph * pw)            # (M,)

    # Fold LayerNorm affine into the projection (exact, done in f32 before the bf16 cast):
    #   (x_hat * gamma + beta) @ W + b == x_hat @ (gamma[:,None]*W) + (beta @ W + b)
    w_eff = gamma.astype(jnp.float32)[:, None] * w_flat                    # (C, M)
    bias_eff = beta.astype(jnp.float32) @ w_flat + bias_flat               # (M,)

    # TODO(synk): int8 (v5e/v6e) / fp8 (v7x) weight quantization is a further halving of
    # the resident weight, but needs a per-chip branch and an accuracy budget; kept bf16.
    w_pad = jnp.pad(w_eff, ((0, 0), (0, Mout - M))).astype(jnp.bfloat16)   # (C, Mout)
    bias_pad = jnp.pad(bias_eff, (0, Mout - M)).reshape(1, Mout)           # (1, Mout) f32

    # --- VMEM budget & token tiling -------------------------------------------------
    x_bytes = jnp.dtype(in_dtype).itemsize
    o_bytes = jnp.dtype(out_dtype).itemsize
    sublane = 16 if (x_bytes == 2 or o_bytes == 2) else 8   # bf16 packs rows in pairs

    try:   # 64 MiB on v7x, 128 MiB on v5e/v6e; leave ~20% headroom for Mosaic scratch
        vmem_cap = int(getattr(pltpu.get_tpu_info(), "vmem_capacity_bytes", 64 << 20))
    except Exception:
        vmem_cap = 64 << 20
    vmem_soft_cap = int(0.8 * vmem_cap)

    w_resident = C * Mout * 2 + Mout * 4                    # bf16 weight + f32 bias
    per_token = 2 * (C * x_bytes + Mout * o_bytes)          # double-buffered x / out tiles
    per_token += (C + Mout) * 4                             # f32 LN / accumulator temps
    cap = max((vmem_soft_cap // 2 - 2 * w_resident) // per_token, sublane)
    cap = min(cap, 1024)

    TN, N_pad = _choose_token_tile(N, sublane, cap)
    n_tiles = N_pad // TN
    if N_pad != N:
        x = jnp.pad(x, ((0, 0), (0, N_pad - N), (0, 0)))    # inert rows, sliced off below

    est_vmem = (2 * w_resident
                + 2 * TN * C * x_bytes + 2 * TN * Mout * o_bytes
                + TN * (C + Mout) * 4)
    vmem_limit = int(min(max(2 * est_vmem, 32 << 20), vmem_soft_cap))

    # TODO(synk): excludes the post-kernel NCHW transpose (separate XLA copy).
    cost = pl.CostEstimate(
        flops=2 * B * N_pad * C * M,                        # logical M, not padded Mout
        transcendentals=B * N_pad,
        bytes_accessed=(B * N_pad * C * x_bytes             # x read
                        + C * Mout * 2 + Mout * 4           # weight + fused bias
                        + B * N_pad * Mout * o_bytes))      # kernel output write

    def _call(const_mode):
        kw = {} if const_mode is None else {"pipeline_mode": const_mode}
        grid_spec = pltpu.PrefetchScalarGridSpec(
            num_scalar_prefetch=0,
            grid=(B, n_tiles),
            in_specs=[
                # TODO(synk): sweep pipeline depth (pl.Buffered(3)) on x/out for tiny C
                # where per-tile compute may not cover DMA latency at depth 2.
                pl.BlockSpec((1, TN, C), lambda b, n: (b, n, 0)),
                # Grid-invariant weight / fused bias: single-buffered, VMEM-resident.
                pl.BlockSpec((C, Mout), lambda b, n: (0, 0), **kw),
                pl.BlockSpec((1, Mout), lambda b, n: (0, 0), **kw),
            ],
            out_specs=pl.BlockSpec((1, TN, Mout), lambda b, n: (b, n, 0)),
        )
        return pl.pallas_call(
            _patch_expansion_kernel,
            out_shape=jax.ShapeDtypeStruct((B, N_pad, Mout), out_dtype),
            grid_spec=grid_spec,
            compiler_params=pltpu.CompilerParams(
                dimension_semantics=("parallel", "parallel"),
                vmem_limit_bytes=vmem_limit),
            cost_estimate=cost,
        )(x, w_pad, bias_pad)

    try:
        out = _call(pl.Buffered(1))
    except Exception:
        # Older jax without BlockSpec pipeline_mode / single-buffering support.
        out = _call(None)

    # TODO(synk): the NCHW scatter stays as one XLA transpose (now reading bf16, half the
    # traffic); an in-kernel (wg, ph, pw, O) rearrange is a lane-crossing pattern Mosaic
    # lowers poorly at small patch sizes.
    out = out[:, :N, :M].reshape(B, hg, wg, out_chans, ph, pw)
    out = jnp.transpose(out, (0, 3, 1, 4, 2, 5))            # (B, O, hg, ph, wg, pw)
    out = out.reshape(B, out_chans, hg * ph, wg * pw)
    return out.astype(in_dtype)


def _reference(x, gamma, beta, w_conv, b_conv, patch_size, out_chans, img_size_in):
    # Pure-JAX f32 reference matching the PyTorch module.
    B, N, C = x.shape
    ph, pw = patch_size
    hg = img_size_in[0] // ph
    wg = img_size_in[1] // pw
    xf = x.astype(jnp.float32)
    mean = jnp.mean(xf, axis=-1, keepdims=True)
    var = jnp.mean((xf - mean) ** 2, axis=-1, keepdims=True)
    x_ln = (xf - mean) / jnp.sqrt(var + 1e-5) * gamma + beta
    y = jnp.einsum("bnc,com->bnom", x_ln,
                   w_conv.reshape(C, out_chans, ph * pw)) + b_conv[None, None, :, None]
    y = y.reshape(B, hg, wg, out_chans, ph, pw)
    y = jnp.transpose(y, (0, 3, 1, 4, 2, 5)).reshape(B, out_chans, hg * ph, wg * pw)
    return y.astype(x.dtype)


if __name__ == "__main__":
    # Small, module-consistent shapes.
    B = 2
    embed_dim = 32
    patch_size = (4, 4)
    out_chans = 4
    img_size_in = (16, 16)
    hg = img_size_in[0] // patch_size[0]
    wg = img_size_in[1] // patch_size[1]
    N = hg * wg

    key = jax.random.PRNGKey(0)
    k_x, k_w, k_b, k_g, k_be = jax.random.split(key, 5)

    x = jax.random.normal(k_x, (B, N, embed_dim), dtype=jnp.float32)
    # ConvTranspose2d weight shape: (in_channels, out_channels, kH, kW)
    w_conv = 0.05 * jax.random.normal(
        k_w, (embed_dim, out_chans, patch_size[0], patch_size[1]), dtype=jnp.float32)
    b_conv = 0.1 * jax.random.normal(k_b, (out_chans,), dtype=jnp.float32)
    # LayerNorm params (PyTorch init gamma=1, beta=0; perturb deterministically)
    gamma = 1.0 + 0.01 * jax.random.normal(k_g, (embed_dim,), dtype=jnp.float32)
    beta = 0.01 * jax.random.normal(k_be, (embed_dim,), dtype=jnp.float32)

    out = patch_expansion(x, gamma, beta, w_conv, b_conv,
                          patch_size, out_chans, img_size_in)
    out = jax.block_until_ready(out)

    ref = _reference(x, gamma, beta, w_conv, b_conv,
                     patch_size, out_chans, img_size_in)
    assert out.shape == (B, out_chans, img_size_in[0], img_size_in[1])
    # bf16 MXU operands / bf16 kernel output with f32 accumulation -> relaxed tolerance.
    assert jnp.allclose(out, ref, atol=2e-2, rtol=2e-2), float(jnp.max(jnp.abs(out - ref)))

    print("KERNEL_OK")
</pallas_src>

<mosaic_0001>
module attributes {stable_mosaic.version = 11 : i64} {
  func.func @_patch_expansion_kernel(%arg0: i32, %arg1: i32, %arg2: memref<1x16x32xf32, #tpu.memory_space<vmem>>, %arg3: memref<32x64xbf16, #tpu.memory_space<vmem>>, %arg4: memref<1x64xf32, #tpu.memory_space<vmem>>, %arg5: memref<1x16x64xbf16, #tpu.memory_space<vmem>>) attributes {dimension_semantics = [#tpu.dimension_semantics<parallel>, #tpu.dimension_semantics<parallel>], iteration_bounds = array<i64: 2, 1>, scalar_prefetch = 0 : i64, scratch_operands = 0 : i64, tpu.core_type = #tpu.core_type<tc>, window_params = [{transform_indices = @transform_0, window_bounds = array<i64: 1, 16, 32>}, {pipeline_mode = #tpu.pipeline_mode<synchronous>, transform_indices = @transform_1, window_bounds = array<i64: 32, 64>}, {pipeline_mode = #tpu.pipeline_mode<synchronous>, transform_indices = @transform_2, window_bounds = array<i64: 1, 64>}, {transform_indices = @transform_3, window_bounds = array<i64: 1, 16, 64>}]} {
    %c0 = arith.constant 0 : index
    %c0_0 = arith.constant 0 : index
    %c0_1 = arith.constant 0 : index
    %0 = vector.load %arg2[%c0, %c0_0, %c0_1] : memref<1x16x32xf32, #tpu.memory_space<vmem>>, vector<1x16x32xf32>
    %1 = vector.shape_cast %0 : vector<1x16x32xf32> to vector<16x32xf32>
    %cst = arith.constant dense<0.000000e+00> : vector<16xf32>
    %2 = vector.multi_reduction <add>, %1, %cst [1] : vector<16x32xf32> to vector<16xf32>
    %3 = vector.shape_cast %2 : vector<16xf32> to vector<16x1xf32>
    %cst_2 = arith.constant 3.125000e-02 : f32
    %4 = vector.broadcast %cst_2 : f32 to vector<16x1xf32>
    %5 = arith.mulf %3, %4 : vector<16x1xf32>
    %6 = arith.mulf %1, %1 : vector<16x32xf32>
    %cst_3 = arith.constant dense<0.000000e+00> : vector<16xf32>
    %7 = vector.multi_reduction <add>, %6, %cst_3 [1] : vector<16x32xf32> to vector<16xf32>
    %8 = vector.shape_cast %7 : vector<16xf32> to vector<16x1xf32>
    %cst_4 = arith.constant 3.125000e-02 : f32
    %9 = vector.broadcast %cst_4 : f32 to vector<16x1xf32>
    %10 = arith.mulf %8, %9 : vector<16x1xf32>
    %11 = arith.mulf %5, %5 : vector<16x1xf32>
    %12 = arith.subf %10, %11 : vector<16x1xf32>
    %cst_5 = arith.constant 0.000000e+00 : f32
    %13 = vector.broadcast %cst_5 : f32 to vector<16x1xf32>
    %14 = arith.maximumf %12, %13 : vector<16x1xf32>
    %15 = vector.broadcast %5 : vector<16x1xf32> to vector<16x32xf32>
    %16 = arith.subf %1, %15 : vector<16x32xf32>
    %cst_6 = arith.constant 9.99999974E-6 : f32
    %17 = vector.broadcast %cst_6 : f32 to vector<16x1xf32>
    %18 = arith.addf %14, %17 : vector<16x1xf32>
    %19 = math.rsqrt %18 : vector<16x1xf32>
    %20 = vector.broadcast %19 : vector<16x1xf32> to vector<16x32xf32>
    %21 = arith.mulf %16, %20 : vector<16x32xf32>
    %22 = arith.truncf %21 : vector<16x32xf32> to vector<16x32xbf16>
    %c0_7 = arith.constant 0 : index
    %c0_8 = arith.constant 0 : index
    %23 = vector.load %arg3[%c0_7, %c0_8] : memref<32x64xbf16, #tpu.memory_space<vmem>>, vector<32x64xbf16>
    %cst_9 = arith.constant dense<0.000000e+00> : vector<16x64xf32>
    %24 = tpu.matmul %22, %23, %cst_9 {dimension_numbers = #tpu.dot_dimension_numbers<[1], [0], [0], [1], [0, 0, 1, 1], [], []>} : vector<16x32xbf16>, vector<32x64xbf16>, vector<16x64xf32> -> vector<16x64xf32>
    %c0_10 = arith.constant 0 : index
    %c0_11 = arith.constant 0 : index
    %25 = vector.load %arg4[%c0_10, %c0_11] : memref<1x64xf32, #tpu.memory_space<vmem>>, vector<1x64xf32>
    %26 = vector.broadcast %25 : vector<1x64xf32> to vector<16x64xf32>
    %27 = arith.addf %24, %26 : vector<16x64xf32>
    %28 = arith.truncf %27 : vector<16x64xf32> to vector<16x64xbf16>
    %c0_12 = arith.constant 0 : index
    %c0_13 = arith.constant 0 : index
    %c0_14 = arith.constant 0 : index
    %29 = vector.load %arg5[%c0_12, %c0_13, %c0_14] : memref<1x16x64xbf16, #tpu.memory_space<vmem>>, vector<1x16x64xbf16>
    %30 = vector.shape_cast %29 : vector<1x16x64xbf16> to vector<16x64xbf16>
    %31 = vector.shape_cast %28 : vector<16x64xbf16> to vector<1x16x64xbf16>
    tpu.vector_store %arg5[%c0_12, %c0_13, %c0_14], %31 {strides = array<i32>} : memref<1x16x64xbf16, #tpu.memory_space<vmem>>, vector<1x16x64xbf16>,
    return
  }
  func.func @transform_0(%arg0: i32, %arg1: i32) -> (i32, i32, i32) {
    %c0_i32 = arith.constant 0 : i32
    %c0_i32_0 = arith.constant 0 : i32
    return %arg0, %arg1, %c0_i32 : i32, i32, i32
  }
  func.func @transform_1(%arg0: i32, %arg1: i32) -> (i32, i32) {
    %c0_i32 = arith.constant 0 : i32
    %c0_i32_0 = arith.constant 0 : i32
    %c0_i32_1 = arith.constant 0 : i32
    return %c0_i32, %c0_i32_0 : i32, i32
  }
  func.func @transform_2(%arg0: i32, %arg1: i32) -> (i32, i32) {
    %c0_i32 = arith.constant 0 : i32
    %c0_i32_0 = arith.constant 0 : i32
    %c0_i32_1 = arith.constant 0 : i32
    return %c0_i32, %c0_i32_0 : i32, i32
  }
  func.func @transform_3(%arg0: i32, %arg1: i32) -> (i32, i32, i32) {
    %c0_i32 = arith.constant 0 : i32
    %c0_i32_0 = arith.constant 0 : i32
    return %arg0, %arg1, %c0_i32 : i32, i32, i32
  }
}

module attributes {stable_mosaic.version = 11 : i64} {
  func.func @_patch_expansion_kernel(%arg0: i32, %arg1: i32, %arg2: memref<1x16x32xf32, #tpu.memory_space<vmem>>, %arg3: memref<32x64xbf16, #tpu.memory_space<vmem>>, %arg4: memref<1x64xf32, #tpu.memory_space<vmem>>, %arg5: memref<1x16x64xbf16, #tpu.memory_space<vmem>>) attributes {dimension_semantics = [#tpu.dimension_semantics<parallel>, #tpu.dimension_semantics<parallel>], iteration_bounds = array<i64: 2, 1>, scalar_prefetch = 0 : i64, scratch_operands = 0 : i64, tpu.core_type = #tpu.core_type<tc>, window_params = [{transform_indices = @transform_0, window_bounds = array<i64: 1, 16, 32>}, {pipeline_mode = #tpu.pipeline_mode<synchronous>, transform_indices = @transform_1, window_bounds = array<i64: 32, 64>}, {pipeline_mode = #tpu.pipeline_mode<synchronous>, transform_indices = @transform_2, window_bounds = array<i64: 1, 64>}, {transform_indices = @transform_3, window_bounds = array<i64: 1, 16, 64>}]} {
    %c0 = arith.constant 0 : index
    %c0_0 = arith.constant 0 : index
    %c0_1 = arith.constant 0 : index
    %0 = vector.load %arg2[%c0, %c0_0, %c0_1] : memref<1x16x32xf32, #tpu.memory_space<vmem>>, vector<1x16x32xf32>
    %1 = vector.shape_cast %0 : vector<1x16x32xf32> to vector<16x32xf32>
    %cst = arith.constant dense<0.000000e+00> : vector<16xf32>
    %2 = vector.multi_reduction <add>, %1, %cst [1] : vector<16x32xf32> to vector<16xf32>
    %3 = vector.shape_cast %2 : vector<16xf32> to vector<16x1xf32>
    %cst_2 = arith.constant 3.125000e-02 : f32
    %4 = vector.broadcast %cst_2 : f32 to vector<16x1xf32>
    %5 = arith.mulf %3, %4 : vector<16x1xf32>
    %6 = arith.mulf %1, %1 : vector<16x32xf32>
    %cst_3 = arith.constant dense<0.000000e+00> : vector<16xf32>
    %7 = vector.multi_reduction <add>, %6, %cst_3 [1] : vector<16x32xf32> to vector<16xf32>
    %8 = vector.shape_cast %7 : vector<16xf32> to vector<16x1xf32>
    %cst_4 = arith.constant 3.125000e-02 : f32
    %9 = vector.broadcast %cst_4 : f32 to vector<16x1xf32>
    %10 = arith.mulf %8, %9 : vector<16x1xf32>
    %11 = arith.mulf %5, %5 : vector<16x1xf32>
    %12 = arith.subf %10, %11 : vector<16x1xf32>
    %cst_5 = arith.constant 0.000000e+00 : f32
    %13 = vector.broadcast %cst_5 : f32 to vector<16x1xf32>
    %14 = arith.maximumf %12, %13 : vector<16x1xf32>
    %15 = vector.broadcast %5 : vector<16x1xf32> to vector<16x32xf32>
    %16 = arith.subf %1, %15 : vector<16x32xf32>
    %cst_6 = arith.constant 9.99999974E-6 : f32
    %17 = vector.broadcast %cst_6 : f32 to vector<16x1xf32>
    %18 = arith.addf %14, %17 : vector<16x1xf32>
    %19 = math.rsqrt %18 : vector<16x1xf32>
    %20 = vector.broadcast %19 : vector<16x1xf32> to vector<16x32xf32>
    %21 = arith.mulf %16, %20 : vector<16x32xf32>
    %22 = arith.truncf %21 : vector<16x32xf32> to vector<16x32xbf16>
    %c0_7 = arith.constant 0 : index
    %c0_8 = arith.constant 0 : index
    %23 = vector.load %arg3[%c0_7, %c0_8] : memref<32x64xbf16, #tpu.memory_space<vmem>>, vector<32x64xbf16>
    %cst_9 = arith.constant dense<0.000000e+00> : vector<16x64xf32>
    %24 = tpu.matmul %22, %23, %cst_9 {dimension_numbers = #tpu.dot_dimension_numbers<[1], [0], [0], [1], [0, 0, 1, 1], [], []>} : vector<16x32xbf16>, vector<32x64xbf16>, vector<16x64xf32> -> vector<16x64xf32>
    %c0_10 = arith.constant 0 : index
    %c0_11 = arith.constant 0 : index
    %25 = vector.load %arg4[%c0_10, %c0_11] : memref<1x64xf32, #tpu.memory_space<vmem>>, vector<1x64xf32>
    %26 = vector.broadcast %25 : vector<1x64xf32> to vector<16x64xf32>
    %27 = arith.addf %24, %26 : vector<16x64xf32>
    %28 = arith.truncf %27 : vector<16x64xf32> to vector<16x64xbf16>
    %c0_12 = arith.constant 0 : index
    %c0_13 = arith.constant 0 : index
    %c0_14 = arith.constant 0 : index
    %29 = vector.load %arg5[%c0_12, %c0_13, %c0_14] : memref<1x16x64xbf16, #tpu.memory_space<vmem>>, vector<1x16x64xbf16>
    %30 = vector.shape_cast %29 : vector<1x16x64xbf16> to vector<16x64xbf16>
    %31 = vector.shape_cast %28 : vector<16x64xbf16> to vector<1x16x64xbf16>
    tpu.vector_store %arg5[%c0_12, %c0_13, %c0_14], %31 {strides = array<i32>} : memref<1x16x64xbf16, #tpu.memory_space<vmem>>, vector<1x16x64xbf16>,
    return
  }
  func.func @transform_0(%arg0: i32, %arg1: i32) -> (i32, i32, i32) {
    %c0_i32 = arith.constant 0 : i32
    %c0_i32_0 = arith.constant 0 : i32
    return %arg0, %arg1, %c0_i32 : i32, i32, i32
  }
  func.func @transform_1(%arg0: i32, %arg1: i32) -> (i32, i32) {
    %c0_i32 = arith.constant 0 : i32
    %c0_i32_0 = arith.constant 0 : i32
    %c0_i32_1 = arith.constant 0 : i32
    return %c0_i32, %c0_i32_0 : i32, i32
  }
  func.func @transform_2(%arg0: i32, %arg1: i32) -> (i32, i32) {
    %c0_i32 = arith.constant 0 : i32
    %c0_i32_0 = arith.constant 0 : i32
    %c0_i32_1 = arith.constant 0 : i32
    return %c0_i32, %c0_i32_0 : i32, i32
  }
  func.func @transform_3(%arg0: i32, %arg1: i32) -> (i32, i32, i32) {
    %c0_i32 = arith.constant 0 : i32
    %c0_i32_0 = arith.constant 0 : i32
    return %arg0, %arg1, %c0_i32 : i32, i32, i32
  }
}

</mosaic_0001>

<llo_original>
// kernel: tpu_custom_call.1
$region0: #{tpu_custom_call.1}
  #allocation0 [shape = 'u32[]', space=smem, size = 0x4, offset = 0x4, fixed_abs, tag = 'smem constant byte address 0x4 - core index']
  #allocation1 [shape = 'u32[144,128]{1,0:T(1,128)}', space=vmem, size = 0x12000, scoped, tag = 'internal scratch']
  %s0 = inlined_call_operand.hbm [shape: f32[2,16,32], index: 0, kind: input, shape index: {}]
  %s1 = inlined_call_operand.hbm [shape: bf16[32,64], index: 1, kind: input, shape index: {}]
  %s2 = inlined_call_operand.vmem [shape: f32[1,64], index: 2, kind: input, shape index: {}]
  %s3 = inlined_call_operand.hbm [shape: bf16[2,16,64], index: 3, kind: output, shape index: {}]
  %s4 = sld [smem:[#allocation0]]
  $region53: #{tpu_custom_call.1} parent=0
    _
  %s6 = ssub.s32 1, %s4
  %s7 = scalar_select 0, %s6, %s4
  $region1: #{tpu_custom_call.1} parent=0
    #allocation2 [shape = 'u8[16384]{0}', space=vmem, size = 0x4000, scoped, tag = 'input window, operand 0']
    #allocation3 [shape = 's32[2]{0}', space=sflag, size = 0x8, scoped, tag = 'scoped memory for tpu_custom_call.1']
    #allocation4 [shape = 's32[2]{0}', space=sflag, size = 0x8, scoped, tag = 'scoped memory for tpu_custom_call.1']
    #allocation5 [shape = 'u8[8192]{0}', space=vmem, size = 0x2000, scoped, tag = 'input window, operand 1, single buffered']
    #allocation6 [shape = 's32[1]{0}', space=sflag, size = 0x4, scoped, tag = 'scoped memory for tpu_custom_call.1']
    #allocation7 [shape = 'u8[8192]{0}', space=vmem, size = 0x2000, scoped, tag = 'output window, operand 0']
    %8 = vsyncpa [#allocation3], 0
    %s9 = scalar_lea.sflag [#allocation3], 1
    %10 = vsyncpa %s9, 0
    %11 = vsyncpa [#allocation6], 0
    %12 = vsyncpa [#allocation4], 0
    %s13 = scalar_lea.sflag [#allocation4], 1
    %14 = vsyncpa %s13, 0
    loop: start=0, step=1, limit=4
    $region2: #{tpu_custom_call.1} parent=1 // loop_pre_header
      _
    $region3: #{tpu_custom_call.1} parent=1 // loop_header
      %s16 = sphi 0, %s20
      %p17 = scmp.ge.s32.totalorder %s16, 4
      %s23 = sphi 0, %s35
      %s24 = sphi 0, %s31
      %s25 = sphi 0, %s23
      %s26 = sphi 0, %s24
      %s27 = sphi 0, %s25
      %s28 = sphi 0, %s26
      %s40 = sphi 0, %s42
      %s43 = sphi 0, %s40
      %s44 = sphi 0, %s43
      %s60 = sphi 0, %s44
      %s64 = sphi 0, %s64
      %s66 = sphi 0, %s64
      %s67 = sphi 0, %s66
      %s81 = sphi 0, %s67
      %s85 = sphi 0, %s85
      %s87 = sphi 0, %s85
      %s88 = sphi 0, %s87
      %s102 = sphi 0, %s88
      %s110 = sphi 0, %s112
      %s113 = sphi 0, %s110
      %s114 = sphi 0, %s113
      %s130 = sphi 0, %s114
    $region4: #{tpu_custom_call.1} parent=1 // loop_header_branch
      %19 = sbr.rel (%p17) target = $region8
    $region5: #{tpu_custom_call.1} parent=1 // loop_body
      %s21 = ssub.s32 %s16, 1
      %s22 = ssub.s32 %s16, 2
      %s29 = sadd.s32 1, %s24
      %p30 = scmp.ge.s32.totalorder %s29, 1
      %s31 = scalar_select %p30, 0, %s29
      %s32 = sadd.s32 1, %s23
      %s33 = scalar_select %p30, %s32, %s23
      %p34 = scmp.ge.s32.totalorder %s33, 2
      %s35 = scalar_select %p34, 0, %s33
      %s36 = ssub.s32 %s23, %s35
      %s37 = ssub.s32 %s24, %s31
      %s38 = sor.u32 %s36, %s37
      %p39 = scmp.eq.s32.totalorder %s38, 0
      %s41 = sadd.s32 %s40, 1
      %s42 = scalar_select %p39, %s40, %s41
      %p45 = pneg %p39
      %p46 = scmp.eq.s32.totalorder %s16, 1
      %p47 = por %p45, %p46
      %p48 = scmp.ne.s32.totalorder %s40, %s43
      %p49 = scmp.eq.s32.totalorder %s16, 0
      %p50 = por %p48, %p49
      %p51 = scmp.ne.s32.totalorder %s40, %s43
      %p52 = scmp.eq.s32.totalorder %s21, 1
      %p53 = por %p51, %p52
      %p54 = scmp.ne.s32.totalorder %s43, %s44
      %p55 = scmp.eq.s32.totalorder %s21, 0
      %p56 = por %p54, %p55
      %p57 = scmp.ne.s32.totalorder %s43, %s44
      %p58 = scmp.eq.s32.totalorder %s22, 1
      %p59 = por %p57, %p58
      %p61 = scmp.ne.s32.totalorder %s44, %s60
      %p62 = scmp.eq.s32.totalorder %s22, 0
      %p63 = por %p61, %p62
      %s65 = sadd.s32 %s64, 1
      %p68 = scmp.eq.s32.totalorder %s16, 1
      %p69 = scmp.ne.s32.totalorder %s64, %s66
      %p70 = scmp.eq.s32.totalorder %s16, 0
      %p71 = por %p69, %p70
      %p72 = scmp.ne.s32.totalorder %s64, %s66
      %p73 = scmp.eq.s32.totalorder %s21, 1
      %p74 = por %p72, %p73
      %p75 = scmp.ne.s32.totalorder %s66, %s67
      %p76 = scmp.eq.s32.totalorder %s21, 0
      %p77 = por %p75, %p76
      %p78 = scmp.ne.s32.totalorder %s66, %s67
      %p79 = scmp.eq.s32.totalorder %s22, 1
      %p80 = por %p78, %p79
      %p82 = scmp.ne.s32.totalorder %s67, %s81
      %p83 = scmp.eq.s32.totalorder %s22, 0
      %p84 = por %p82, %p83
      %s86 = sadd.s32 %s85, 1
      %p89 = scmp.eq.s32.totalorder %s16, 1
      %p90 = scmp.ne.s32.totalorder %s85, %s87
      %p91 = scmp.eq.s32.totalorder %s16, 0
      %p92 = por %p90, %p91
      %p93 = scmp.ne.s32.totalorder %s85, %s87
      %p94 = scmp.eq.s32.totalorder %s21, 1
      %p95 = por %p93, %p94
      %p96 = scmp.ne.s32.totalorder %s87, %s88
      %p97 = scmp.eq.s32.totalorder %s21, 0
      %p98 = por %p96, %p97
      %p99 = scmp.ne.s32.totalorder %s87, %s88
      %p100 = scmp.eq.s32.totalorder %s22, 1
      %p101 = por %p99, %p100
      %p103 = scmp.ne.s32.totalorder %s88, %s102
      %p104 = scmp.eq.s32.totalorder %s22, 0
      %p105 = por %p103, %p104
      %s106 = ssub.s32 %s23, %s35
      %s107 = ssub.s32 %s24, %s31
      %s108 = sor.u32 %s106, %s107
      %p109 = scmp.eq.s32.totalorder %s108, 0
      %s111 = sadd.s32 %s110, 1
      %s112 = scalar_select %p109, %s110, %s111
      %p115 = pneg %p109
      %p116 = scmp.eq.s32.totalorder %s16, 1
      %p117 = por %p115, %p116
      %p118 = scmp.ne.s32.totalorder %s110, %s113
      %p119 = scmp.eq.s32.totalorder %s16, 0
      %p120 = por %p118, %p119
      %p121 = scmp.ne.s32.totalorder %s110, %s113
      %p122 = scmp.eq.s32.totalorder %s21, 1
      %p123 = por %p121, %p122
      %p124 = scmp.ne.s32.totalorder %s113, %s114
      %p125 = scmp.eq.s32.totalorder %s21, 0
      %p126 = por %p124, %p125
      %p127 = scmp.ne.s32.totalorder %s113, %s114
      %p128 = scmp.eq.s32.totalorder %s22, 1
      %p129 = por %p127, %p128
      %p131 = scmp.ne.s32.totalorder %s114, %s130
      %p132 = scmp.eq.s32.totalorder %s22, 0
      %p133 = por %p131, %p132
      %p134 = scmp.le.s32.totalorder 1, %s16
      %p135 = scmp.lt.s32.totalorder %s16, 3
      %p136 = pnand %p134, %p135
      %p137 = pneg %p136
      // Predicated region
      $region9: #{tpu_custom_call.1} parent=5 // pred_check
        _
      $region10: #{tpu_custom_call.1} parent=5 // pred_check_branch
        %139 = sbr.rel (%p136) target = $region12
      $region11: #{tpu_custom_call.1} parent=5 // pred_region
        %s140 = ssub.s32 %s16, 1
        // Predicated region
        $region13: #{tpu_custom_call.1} parent=11 // pred_check
          %p141 = pneg %p77
        $region14: #{tpu_custom_call.1} parent=11 // pred_check_branch
          %143 = sbr.rel (%p141) target = $region16
        $region15: #{tpu_custom_call.1} parent=11 // pred_region
          %s145 = ssub.s32 256, 256
          %146 = vsyncadd [#allocation6], %s145
          %s147 = sshll.u32 [#allocation5], 4
          %s148 = int_to_ptr.vmem [resolvable:$true] %s147
          %153 = dma.hbm_to_vmem [thread:$0]  %s1, 256, %s148, [#allocation6], 64, 64, 4
        $region16: #{tpu_custom_call.1} parent=11 // pred_fallthru
          _
        // Predicated region
        $region17: #{tpu_custom_call.1} parent=11 // pred_check
          %p154 = pneg %p98
        $region18: #{tpu_custom_call.1} parent=11 // pred_check_branch
          %156 = sbr.rel (%p154) target = $region20
        $region19: #{tpu_custom_call.1} parent=11 // pred_region
          _
        $region20: #{tpu_custom_call.1} parent=11 // pred_fallthru
          _
      $region12: #{tpu_custom_call.1} parent=5 // pred_fallthru
        _
      %p157 = scmp.lt.s32.totalorder %s16, 2
      // Predicated region
      $region21: #{tpu_custom_call.1} parent=5 // pred_check
        %p158 = pneg %p157
      $region22: #{tpu_custom_call.1} parent=5 // pred_check_branch
        %160 = sbr.rel (%p158) target = $region24
      $region23: #{tpu_custom_call.1} parent=5 // pred_region
        // Predicated region
        $region25: #{tpu_custom_call.1} parent=23 // pred_check
          %p161 = pneg %p50
        $region26: #{tpu_custom_call.1} parent=23 // pred_check_branch
          %163 = sbr.rel (%p161) target = $region28
        $region27: #{tpu_custom_call.1} parent=23 // pred_region
          %s164 = sand.u32 %s40, 1
          %s165 = scalar_lea.sflag [#allocation3], %s164
          %s166 = sand.u32 %s40, 1
          %s167 = smul.addr %s166, 16
          %s168 = scalar_lea.vmem [#allocation2], %s167
          %s169 = smul.u32 2, %s24
          %s171 = ssub.s32 256, 256
          %172 = vsyncadd %s165, %s171
          %s173 = smul.addr %s23, 2
          %s174 = sadd.s32 %s169, %s173
          %s175 = smul.addr %s174, 128
          %s176 = scalar_lea.hbm %s0, %s175
          %s177 = sshll.u32 %s168, 4
          %s178 = int_to_ptr.vmem [resolvable:$true] %s177
          %183 = dma.hbm_to_vmem [thread:$0]  %s176, 256, %s178, %s165, 128, 128, 8
        $region28: #{tpu_custom_call.1} parent=23 // pred_fallthru
          _
      $region24: #{tpu_custom_call.1} parent=5 // pred_fallthru
        _
      %p184 = scmp.le.s32.totalorder 1, %s16
      %p185 = scmp.lt.s32.totalorder %s16, 3
      %p186 = pnand %p184, %p185
      %p187 = pneg %p186
      // Predicated region
      $region29: #{tpu_custom_call.1} parent=5 // pred_check
        _
      $region30: #{tpu_custom_call.1} parent=5 // pred_check_branch
        %189 = sbr.rel (%p186) target = $region32
      $region31: #{tpu_custom_call.1} parent=5 // pred_region
        %s190 = ssub.s32 %s16, 1
        %s191 = sand.u32 %s43, 1
        %s192 = scalar_lea.sflag [#allocation3], %s191
        %s193 = sand.u32 %s43, 1
        %s194 = smul.addr %s193, 16
        %s195 = scalar_lea.vmem [#allocation2], %s194
        // Predicated region
        $region33: #{tpu_custom_call.1} parent=31 // pred_check
          %p196 = pneg %p56
        $region34: #{tpu_custom_call.1} parent=31 // pred_check_branch
          %198 = sbr.rel (%p196) target = $region36
        $region35: #{tpu_custom_call.1} parent=31 // pred_region
          %199 = dma.done %s192, 256
        $region36: #{tpu_custom_call.1} parent=31 // pred_fallthru
          _
        // Predicated region
        $region37: #{tpu_custom_call.1} parent=31 // pred_check
          %p200 = pneg %p77
        $region38: #{tpu_custom_call.1} parent=31 // pred_check_branch
          %202 = sbr.rel (%p200) target = $region40
        $region39: #{tpu_custom_call.1} parent=31 // pred_region
          %203 = dma.done [#allocation6], 256
        $region40: #{tpu_custom_call.1} parent=31 // pred_fallthru
          _
        %s204 = sand.u32 %s43, 1
        %s205 = scalar_lea.sflag [#allocation3], %s204
        %s206 = sand.u32 %s43, 1
        %s207 = smul.addr %s206, 16
        %s208 = scalar_lea.vmem [#allocation2], %s207
        %p209 = pneg %p56
        %p210 = pneg %p53
        %p211 = pneg %p77
        %p212 = pneg %p74
        %p213 = pneg %p98
        %p214 = pneg %p95
        %p215 = pneg %p126
        %p216 = pneg %p123
        %s217 = sand.u32 %s113, 1
        %s218 = scalar_lea.sflag [#allocation4], %s217
        %s219 = sand.u32 %s113, 1
        %s220 = smul.addr %s219, 8
        %s221 = scalar_lea.vmem [#allocation7], %s220
        %s222 = smul.u32 2, %s26
        %s223 = smul.u32 2, %s26
        %v225 = vld [vmem:[%s195] sm:$0xff]
        %v226 = vld [vmem:[%s195 + $0x8] sm:$0xff]
        %vm227 = vcmask 261120
        %v228 = vsel %vm227, %v225, 0.0
        %229 = vadd.xlane.f32.xlu0 %v228
        %v230 = vpop.xlane.xlu0 %229
        %v231 = vsel %vm227, %v226, 0.0
        %232 = vadd.xlane.f32.xlu0 %v231
        %v233 = vpop.xlane.xlu0 %232
        %v234 = vmul.f32 %v230, 0.03125
        %v235 = vmul.f32 %v233, 0.03125
        %v236 = vmul.f32 %v225, %v225
        %v237 = vmul.f32 %v226, %v226
        %v238 = vsel %vm227, %v236, 0.0
        %239 = vadd.xlane.f32.xlu0 %v238
        %v240 = vpop.xlane.xlu0 %239
        %v241 = vsel %vm227, %v237, 0.0
        %242 = vadd.xlane.f32.xlu0 %v241
        %v243 = vpop.xlane.xlu0 %242
        %v244 = vmul.f32 %v240, 0.03125
        %v245 = vmul.f32 %v243, 0.03125
        %v246 = vmul.f32 %v234, %v234
        %v247 = vmul.f32 %v235, %v235
        %v248 = vsub.f32 %v244, %v246
        %v249 = vsub.f32 %v245, %v247
        %v250 = vmax.f32 %v248, 0.0
        %v251 = vmax.f32 %v249, 0.0
        %v252 = vsub.f32 %v225, %v234
        %v253 = vsub.f32 %v226, %v235
        %v254 = vadd.f32 %v250, 1e-05
        %v255 = vadd.f32 %v251, 1e-05
        %v256 = vrsqrt.pop %v254
        %v257 = vrsqrt.pop %v255
        %v258 = vmul.f32 %v252, %v256
        %v259 = vmul.f32 %v253, %v257
        %v260 = vpack.c.bf16 %v259, %v258
        %v261 = vld [vmem:[#allocation5] sm:$0xf]
        %v262 = vld [vmem:[#allocation5 + $0x4] sm:$0xf]
        %v263 = vld [vmem:[#allocation5 + $0x8] sm:$0xf]
        %v264 = vld [vmem:[#allocation5 + $0xc] sm:$0xf]
        %v265 = vld [vmem:[%s2] sm:$0x1]
        %v267 = vlaneseq
        %v268 = vshrl.u32 %v267, 7
        %v269 = vsub.s32 0, %v268
        %v270 = vrot.slane %v265, %v269
        %v276 = vunpack.c.l.b16 %v261
        %v277 = vunpack.c.l.b16 %v262
        %v278 = vunpack.c.l.b16 %v263
        %v279 = vunpack.c.l.b16 %v264
        %v280 = vpack.c.b16 %v277, %v276
        %v281 = vpack.c.b16 %v279, %v278
        %v285 = vsel %vm227, %v260, 0
        %287 = vmatprep.subr.bf16.mxu0 0
        %288 = vmatpush1.bf16.msra.mxu0 0
        %289 = vmatprep.subr.bf16.mxu0 0
        %290 = vmatpush1.bf16.msra.mxu0 0
        %291 = vmatprep.subr.bf16.mxu0 0
        %292 = vmatpush1.bf16.msra.mxu0 0
        %293 = vmatprep.subr.bf16.mxu0 0
        %294 = vmatpush1.bf16.msra.mxu0 0
        %295 = vmatprep.subr.bf16.mxu0 0
        %296 = vmatpush1.bf16.msra.mxu0 0
        %297 = vmatprep.subr.bf16.mxu0 0
        %298 = vmatpush1.bf16.msra.mxu0 0
        %299 = vmatprep.subr.bf16.mxu0 0
        %300 = vmatpush1.bf16.msra.mxu0 %v281
        %301 = vmatprep.subr.bf16.mxu0 0
        %302 = vmatpush1.bf16.msra.mxu0 %v280
        %303 = vmatprep.subr.bf16.mxu0 0
        %304 = vmatpush2.bf16.msra.mxu0 0
        %305 = vmatprep.subr.bf16.mxu0 0
        %306 = vmatpush2.bf16.msra.mxu0 0
        %307 = vmatprep.subr.bf16.mxu0 0
        %308 = vmatpush2.bf16.msra.mxu0 0
        %309 = vmatprep.subr.bf16.mxu0 0
        %310 = vmatpush2.bf16.msra.mxu0 0
        %311 = vmatprep.subr.bf16.mxu0 0
        %312 = vmatpush2.bf16.msra.mxu0 0
        %313 = vmatprep.subr.bf16.mxu0 0
        %314 = vmatpush2.bf16.msra.mxu0 0
        %315 = vmatprep.subr.bf16.mxu0 0
        %316 = vmatpush2.bf16.msra.mxu0 0
        %317 = vmatprep.subr.bf16.mxu0 0
        %318 = vmatpush2.bf16.msra.mxu0 0
        %319 = vmatprep.mubr.bf16.mxu0 0
        %320 = vmatmul.mubr.bf16.gmra.mxu0 %v285
        %v321 = vpop.f32.mrf.mxu0
        %v322 = vadd.f32 %v270, %v321
        %v323 = vpop.f32.mrf.mxu0
        %v324 = vpop.f32.mrf.mxu0
        %v325 = vadd.f32 %v270, %v324
        %v326 = vpop.f32.mrf.mxu0
        %327 = vdwg.mxu0
        %v328 = vpack.c.bf16 %v325, %v322
        %v330 = vunpack.c.l.b16 %v328
        %v331 = vunpack.c.h.b16 %v328
        %v332 = vpack.c.b16 %v330, %v330
        %v333 = vpack.c.b16 %v331, %v331
        %vm336 = vcmask 519168
        %337 = vst.msk [vmem:[%s221] sm:$0xf] %vm336, %v332
        %338 = vst.msk [vmem:[%s221 + $0x4] sm:$0xf] %vm336, %v333
        %s339 = sand.u32 %s113, 1
        %s340 = scalar_lea.sflag [#allocation4], %s339
        %s341 = sand.u32 %s113, 1
        %s342 = smul.addr %s341, 8
        %s343 = scalar_lea.vmem [#allocation7], %s342
        // Predicated region
        $region41: #{tpu_custom_call.1} parent=31 // pred_check
          %p344 = pneg %p123
        $region42: #{tpu_custom_call.1} parent=31 // pred_check_branch
          %346 = sbr.rel (%p344) target = $region44
        $region43: #{tpu_custom_call.1} parent=31 // pred_region
          %s347 = smul.u32 2, %s26
          %s349 = ssub.s32 128, 128
          %350 = vsyncadd %s340, %s349
          %s351 = smul.addr %s25, 2
          %s352 = sadd.s32 %s347, %s351
          %s353 = smul.addr %s352, 64
          %s354 = scalar_lea.hbm %s3, %s353
          %s355 = sshll.u32 %s343, 4
          %s356 = int_to_ptr.vmem [resolvable:$true] %s355
          %361 = dma.vmem_to_hbm [thread:$0]  %s356, 128, %s354, %s340, 64, 64, 4
        $region44: #{tpu_custom_call.1} parent=31 // pred_fallthru
          _
      $region32: #{tpu_custom_call.1} parent=5 // pred_fallthru
        _
      %p362 = scmp.le.s32.totalorder 2, %s16
      // Predicated region
      $region45: #{tpu_custom_call.1} parent=5 // pred_check
        %p363 = pneg %p362
      $region46: #{tpu_custom_call.1} parent=5 // pred_check_branch
        %365 = sbr.rel (%p363) target = $region48
      $region47: #{tpu_custom_call.1} parent=5 // pred_region
        %s366 = ssub.s32 %s16, 2
        // Predicated region
        $region49: #{tpu_custom_call.1} parent=47 // pred_check
          %p367 = pneg %p129
        $region50: #{tpu_custom_call.1} parent=47 // pred_check_branch
          %369 = sbr.rel (%p367) target = $region52
        $region51: #{tpu_custom_call.1} parent=47 // pred_region
          %s370 = sand.u32 %s114, 1
          %s371 = scalar_lea.sflag [#allocation4], %s370
          %s372 = sand.u32 %s114, 1
          %s373 = smul.addr %s372, 8
          %s374 = scalar_lea.vmem [#allocation7], %s373
          %375 = dma.done %s371, 128
        $region52: #{tpu_custom_call.1} parent=47 // pred_fallthru
          _
      $region48: #{tpu_custom_call.1} parent=5 // pred_fallthru
        _
    $region6: #{tpu_custom_call.1} parent=1 // loop_footer
      %s20 = sadd.s32 1, %s16
    $region7: #{tpu_custom_call.1} parent=1 // loop_footer_branch
      %15 = sbr.rel target = $region3
    $region8: #{tpu_custom_call.1} parent=1 // loop_exit
      _
    %376 = vsyncpa [#allocation3], 1
    %s377 = scalar_lea.sflag [#allocation3], 1
    %378 = vsyncpa %s377, 1
    %379 = vsyncpa [#allocation6], 1
    %380 = vsyncpa [#allocation4], 1
    %s381 = scalar_lea.sflag [#allocation4], 1
    %382 = vsyncpa %s381, 1

// kernel: tpu_custom_call.1
$region0: #{tpu_custom_call.1}
  #allocation0 [shape = 'u32[]', space=smem, size = 0x4, offset = 0x4, fixed_abs, tag = 'smem constant byte address 0x4 - core index']
  #allocation1 [shape = 'u32[144,128]{1,0:T(1,128)}', space=vmem, size = 0x12000, scoped, tag = 'internal scratch']
  %s0 = inlined_call_operand.hbm [shape: f32[2,16,32], index: 0, kind: input, shape index: {}]
  %s1 = inlined_call_operand.hbm [shape: bf16[32,64], index: 1, kind: input, shape index: {}]
  %s2 = inlined_call_operand.vmem [shape: f32[1,64], index: 2, kind: input, shape index: {}]
  %s3 = inlined_call_operand.hbm [shape: bf16[2,16,64], index: 3, kind: output, shape index: {}]
  %s4 = sld [smem:[#allocation0]]
  $region53: #{tpu_custom_call.1} parent=0
    _
  %s6 = ssub.s32 1, %s4
  %s7 = scalar_select 0, %s6, %s4
  $region1: #{tpu_custom_call.1} parent=0
    #allocation2 [shape = 'u8[16384]{0}', space=vmem, size = 0x4000, scoped, tag = 'input window, operand 0']
    #allocation3 [shape = 's32[2]{0}', space=sflag, size = 0x8, scoped, tag = 'scoped memory for tpu_custom_call.1']
    #allocation4 [shape = 's32[2]{0}', space=sflag, size = 0x8, scoped, tag = 'scoped memory for tpu_custom_call.1']
    #allocation5 [shape = 'u8[8192]{0}', space=vmem, size = 0x2000, scoped, tag = 'input window, operand 1, single buffered']
    #allocation6 [shape = 's32[1]{0}', space=sflag, size = 0x4, scoped, tag = 'scoped memory for tpu_custom_call.1']
    #allocation7 [shape = 'u8[8192]{0}', space=vmem, size = 0x2000, scoped, tag = 'output window, operand 0']
    %8 = vsyncpa [#allocation3], 0
    %s9 = scalar_lea.sflag [#allocation3], 1
    %10 = vsyncpa %s9, 0
    %11 = vsyncpa [#allocation6], 0
    %12 = vsyncpa [#allocation4], 0
    %s13 = scalar_lea.sflag [#allocation4], 1
    %14 = vsyncpa %s13, 0
    loop: start=0, step=1, limit=4
    $region2: #{tpu_custom_call.1} parent=1 // loop_pre_header
      _
    $region3: #{tpu_custom_call.1} parent=1 // loop_header
      %s16 = sphi 0, %s20
      %p17 = scmp.ge.s32.totalorder %s16, 4
      %s23 = sphi 0, %s35
      %s24 = sphi 0, %s31
      %s25 = sphi 0, %s23
      %s26 = sphi 0, %s24
      %s27 = sphi 0, %s25
      %s28 = sphi 0, %s26
      %s40 = sphi 0, %s42
      %s43 = sphi 0, %s40
      %s44 = sphi 0, %s43
      %s60 = sphi 0, %s44
      %s64 = sphi 0, %s64
      %s66 = sphi 0, %s64
      %s67 = sphi 0, %s66
      %s81 = sphi 0, %s67
      %s85 = sphi 0, %s85
      %s87 = sphi 0, %s85
      %s88 = sphi 0, %s87
      %s102 = sphi 0, %s88
      %s110 = sphi 0, %s112
      %s113 = sphi 0, %s110
      %s114 = sphi 0, %s113
      %s130 = sphi 0, %s114
    $region4: #{tpu_custom_call.1} parent=1 // loop_header_branch
      %19 = sbr.rel (%p17) target = $region8
    $region5: #{tpu_custom_call.1} parent=1 // loop_body
      %s21 = ssub.s32 %s16, 1
      %s22 = ssub.s32 %s16, 2
      %s29 = sadd.s32 1, %s24
      %p30 = scmp.ge.s32.totalorder %s29, 1
      %s31 = scalar_select %p30, 0, %s29
      %s32 = sadd.s32 1, %s23
      %s33 = scalar_select %p30, %s32, %s23
      %p34 = scmp.ge.s32.totalorder %s33, 2
      %s35 = scalar_select %p34, 0, %s33
      %s36 = ssub.s32 %s23, %s35
      %s37 = ssub.s32 %s24, %s31
      %s38 = sor.u32 %s36, %s37
      %p39 = scmp.eq.s32.totalorder %s38, 0
      %s41 = sadd.s32 %s40, 1
      %s42 = scalar_select %p39, %s40, %s41
      %p45 = pneg %p39
      %p46 = scmp.eq.s32.totalorder %s16, 1
      %p47 = por %p45, %p46
      %p48 = scmp.ne.s32.totalorder %s40, %s43
      %p49 = scmp.eq.s32.totalorder %s16, 0
      %p50 = por %p48, %p49
      %p51 = scmp.ne.s32.totalorder %s40, %s43
      %p52 = scmp.eq.s32.totalorder %s21, 1
      %p53 = por %p51, %p52
      %p54 = scmp.ne.s32.totalorder %s43, %s44
      %p55 = scmp.eq.s32.totalorder %s21, 0
      %p56 = por %p54, %p55
      %p57 = scmp.ne.s32.totalorder %s43, %s44
      %p58 = scmp.eq.s32.totalorder %s22, 1
      %p59 = por %p57, %p58
      %p61 = scmp.ne.s32.totalorder %s44, %s60
      %p62 = scmp.eq.s32.totalorder %s22, 0
      %p63 = por %p61, %p62
      %s65 = sadd.s32 %s64, 1
      %p68 = scmp.eq.s32.totalorder %s16, 1
      %p69 = scmp.ne.s32.totalorder %s64, %s66
      %p70 = scmp.eq.s32.totalorder %s16, 0
      %p71 = por %p69, %p70
      %p72 = scmp.ne.s32.totalorder %s64, %s66
      %p73 = scmp.eq.s32.totalorder %s21, 1
      %p74 = por %p72, %p73
      %p75 = scmp.ne.s32.totalorder %s66, %s67
      %p76 = scmp.eq.s32.totalorder %s21, 0
      %p77 = por %p75, %p76
      %p78 = scmp.ne.s32.totalorder %s66, %s67
      %p79 = scmp.eq.s32.totalorder %s22, 1
      %p80 = por %p78, %p79
      %p82 = scmp.ne.s32.totalorder %s67, %s81
      %p83 = scmp.eq.s32.totalorder %s22, 0
      %p84 = por %p82, %p83
      %s86 = sadd.s32 %s85, 1
      %p89 = scmp.eq.s32.totalorder %s16, 1
      %p90 = scmp.ne.s32.totalorder %s85, %s87
      %p91 = scmp.eq.s32.totalorder %s16, 0
      %p92 = por %p90, %p91
      %p93 = scmp.ne.s32.totalorder %s85, %s87
      %p94 = scmp.eq.s32.totalorder %s21, 1
      %p95 = por %p93, %p94
      %p96 = scmp.ne.s32.totalorder %s87, %s88
      %p97 = scmp.eq.s32.totalorder %s21, 0
      %p98 = por %p96, %p97
      %p99 = scmp.ne.s32.totalorder %s87, %s88
      %p100 = scmp.eq.s32.totalorder %s22, 1
      %p101 = por %p99, %p100
      %p103 = scmp.ne.s32.totalorder %s88, %s102
      %p104 = scmp.eq.s32.totalorder %s22, 0
      %p105 = por %p103, %p104
      %s106 = ssub.s32 %s23, %s35
      %s107 = ssub.s32 %s24, %s31
      %s108 = sor.u32 %s106, %s107
      %p109 = scmp.eq.s32.totalorder %s108, 0
      %s111 = sadd.s32 %s110, 1
      %s112 = scalar_select %p109, %s110, %s111
      %p115 = pneg %p109
      %p116 = scmp.eq.s32.totalorder %s16, 1
      %p117 = por %p115, %p116
      %p118 = scmp.ne.s32.totalorder %s110, %s113
      %p119 = scmp.eq.s32.totalorder %s16, 0
      %p120 = por %p118, %p119
      %p121 = scmp.ne.s32.totalorder %s110, %s113
      %p122 = scmp.eq.s32.totalorder %s21, 1
      %p123 = por %p121, %p122
      %p124 = scmp.ne.s32.totalorder %s113, %s114
      %p125 = scmp.eq.s32.totalorder %s21, 0
      %p126 = por %p124, %p125
      %p127 = scmp.ne.s32.totalorder %s113, %s114
      %p128 = scmp.eq.s32.totalorder %s22, 1
      %p129 = por %p127, %p128
      %p131 = scmp.ne.s32.totalorder %s114, %s130
      %p132 = scmp.eq.s32.totalorder %s22, 0
      %p133 = por %p131, %p132
      %p134 = scmp.le.s32.totalorder 1, %s16
      %p135 = scmp.lt.s32.totalorder %s16, 3
      %p136 = pnand %p134, %p135
      %p137 = pneg %p136
      // Predicated region
      $region9: #{tpu_custom_call.1} parent=5 // pred_check
        _
      $region10: #{tpu_custom_call.1} parent=5 // pred_check_branch
        %139 = sbr.rel (%p136) target = $region12
      $region11: #{tpu_custom_call.1} parent=5 // pred_region
        %s140 = ssub.s32 %s16, 1
        // Predicated region
        $region13: #{tpu_custom_call.1} parent=11 // pred_check
          %p141 = pneg %p77
        $region14: #{tpu_custom_call.1} parent=11 // pred_check_branch
          %143 = sbr.rel (%p141) target = $region16
        $region15: #{tpu_custom_call.1} parent=11 // pred_region
          %s145 = ssub.s32 256, 256
          %146 = vsyncadd [#allocation6], %s145
          %s147 = sshll.u32 [#allocation5], 4
          %s148 = int_to_ptr.vmem [resolvable:$true] %s147
          %153 = dma.hbm_to_vmem [thread:$0]  %s1, 256, %s148, [#allocation6], 64, 64, 4
        $region16: #{tpu_custom_call.1} parent=11 // pred_fallthru
          _
        // Predicated region
        $region17: #{tpu_custom_call.1} parent=11 // pred_check
          %p154 = pneg %p98
        $region18: #{tpu_custom_call.1} parent=11 // pred_check_branch
          %156 = sbr.rel (%p154) target = $region20
        $region19: #{tpu_custom_call.1} parent=11 // pred_region
          _
        $region20: #{tpu_custom_call.1} parent=11 // pred_fallthru
          _
      $region12: #{tpu_custom_call.1} parent=5 // pred_fallthru
        _
      %p157 = scmp.lt.s32.totalorder %s16, 2
      // Predicated region
      $region21: #{tpu_custom_call.1} parent=5 // pred_check
        %p158 = pneg %p157
      $region22: #{tpu_custom_call.1} parent=5 // pred_check_branch
        %160 = sbr.rel (%p158) target = $region24
      $region23: #{tpu_custom_call.1} parent=5 // pred_region
        // Predicated region
        $region25: #{tpu_custom_call.1} parent=23 // pred_check
          %p161 = pneg %p50
        $region26: #{tpu_custom_call.1} parent=23 // pred_check_branch
          %163 = sbr.rel (%p161) target = $region28
        $region27: #{tpu_custom_call.1} parent=23 // pred_region
          %s164 = sand.u32 %s40, 1
          %s165 = scalar_lea.sflag [#allocation3], %s164
          %s166 = sand.u32 %s40, 1
          %s167 = smul.addr %s166, 16
          %s168 = scalar_lea.vmem [#allocation2], %s167
          %s169 = smul.u32 2, %s24
          %s171 = ssub.s32 256, 256
          %172 = vsyncadd %s165, %s171
          %s173 = smul.addr %s23, 2
          %s174 = sadd.s32 %s169, %s173
          %s175 = smul.addr %s174, 128
          %s176 = scalar_lea.hbm %s0, %s175
          %s177 = sshll.u32 %s168, 4
          %s178 = int_to_ptr.vmem [resolvable:$true] %s177
          %183 = dma.hbm_to_vmem [thread:$0]  %s176, 256, %s178, %s165, 128, 128, 8
        $region28: #{tpu_custom_call.1} parent=23 // pred_fallthru
          _
      $region24: #{tpu_custom_call.1} parent=5 // pred_fallthru
        _
      %p184 = scmp.le.s32.totalorder 1, %s16
      %p185 = scmp.lt.s32.totalorder %s16, 3
      %p186 = pnand %p184, %p185
      %p187 = pneg %p186
      // Predicated region
      $region29: #{tpu_custom_call.1} parent=5 // pred_check
        _
      $region30: #{tpu_custom_call.1} parent=5 // pred_check_branch
        %189 = sbr.rel (%p186) target = $region32
      $region31: #{tpu_custom_call.1} parent=5 // pred_region
        %s190 = ssub.s32 %s16, 1
        %s191 = sand.u32 %s43, 1
        %s192 = scalar_lea.sflag [#allocation3], %s191
        %s193 = sand.u32 %s43, 1
        %s194 = smul.addr %s193, 16
        %s195 = scalar_lea.vmem [#allocation2], %s194
        // Predicated region
        $region33: #{tpu_custom_call.1} parent=31 // pred_check
          %p196 = pneg %p56
        $region34: #{tpu_custom_call.1} parent=31 // pred_check_branch
          %198 = sbr.rel (%p196) target = $region36
        $region35: #{tpu_custom_call.1} parent=31 // pred_region
          %199 = dma.done %s192, 256
        $region36: #{tpu_custom_call.1} parent=31 // pred_fallthru
          _
        // Predicated region
        $region37: #{tpu_custom_call.1} parent=31 // pred_check
          %p200 = pneg %p77
        $region38: #{tpu_custom_call.1} parent=31 // pred_check_branch
          %202 = sbr.rel (%p200) target = $region40
        $region39: #{tpu_custom_call.1} parent=31 // pred_region
          %203 = dma.done [#allocation6], 256
        $region40: #{tpu_custom_call.1} parent=31 // pred_fallthru
          _
        %s204 = sand.u32 %s43, 1
        %s205 = scalar_lea.sflag [#allocation3], %s204
        %s206 = sand.u32 %s43, 1
        %s207 = smul.addr %s206, 16
        %s208 = scalar_lea.vmem [#allocation2], %s207
        %p209 = pneg %p56
        %p210 = pneg %p53
        %p211 = pneg %p77
        %p212 = pneg %p74
        %p213 = pneg %p98
        %p214 = pneg %p95
        %p215 = pneg %p126
        %p216 = pneg %p123
        %s217 = sand.u32 %s113, 1
        %s218 = scalar_lea.sflag [#allocation4], %s217
        %s219 = sand.u32 %s113, 1
        %s220 = smul.addr %s219, 8
        %s221 = scalar_lea.vmem [#allocation7], %s220
        %s222 = smul.u32 2, %s26
        %s223 = smul.u32 2, %s26
        %v225 = vld [vmem:[%s195] sm:$0xff]
        %v226 = vld [vmem:[%s195 + $0x8] sm:$0xff]
        %vm227 = vcmask 261120
        %v228 = vsel %vm227, %v225, 0.0
        %229 = vadd.xlane.f32.xlu0 %v228
        %v230 = vpop.xlane.xlu0 %229
        %v231 = vsel %vm227, %v226, 0.0
        %232 = vadd.xlane.f32.xlu0 %v231
        %v233 = vpop.xlane.xlu0 %232
        %v234 = vmul.f32 %v230, 0.03125
        %v235 = vmul.f32 %v233, 0.03125
        %v236 = vmul.f32 %v225, %v225
        %v237 = vmul.f32 %v226, %v226
        %v238 = vsel %vm227, %v236, 0.0
        %239 = vadd.xlane.f32.xlu0 %v238
        %v240 = vpop.xlane.xlu0 %239
        %v241 = vsel %vm227, %v237, 0.0
        %242 = vadd.xlane.f32.xlu0 %v241
        %v243 = vpop.xlane.xlu0 %242
        %v244 = vmul.f32 %v240, 0.03125
        %v245 = vmul.f32 %v243, 0.03125
        %v246 = vmul.f32 %v234, %v234
        %v247 = vmul.f32 %v235, %v235
        %v248 = vsub.f32 %v244, %v246
        %v249 = vsub.f32 %v245, %v247
        %v250 = vmax.f32 %v248, 0.0
        %v251 = vmax.f32 %v249, 0.0
        %v252 = vsub.f32 %v225, %v234
        %v253 = vsub.f32 %v226, %v235
        %v254 = vadd.f32 %v250, 1e-05
        %v255 = vadd.f32 %v251, 1e-05
        %v256 = vrsqrt.pop %v254
        %v257 = vrsqrt.pop %v255
        %v258 = vmul.f32 %v252, %v256
        %v259 = vmul.f32 %v253, %v257
        %v260 = vpack.c.bf16 %v259, %v258
        %v261 = vld [vmem:[#allocation5] sm:$0xf]
        %v262 = vld [vmem:[#allocation5 + $0x4] sm:$0xf]
        %v263 = vld [vmem:[#allocation5 + $0x8] sm:$0xf]
        %v264 = vld [vmem:[#allocation5 + $0xc] sm:$0xf]
        %v265 = vld [vmem:[%s2] sm:$0x1]
        %v267 = vlaneseq
        %v268 = vshrl.u32 %v267, 7
        %v269 = vsub.s32 0, %v268
        %v270 = vrot.slane %v265, %v269
        %v276 = vunpack.c.l.b16 %v261
        %v277 = vunpack.c.l.b16 %v262
        %v278 = vunpack.c.l.b16 %v263
        %v279 = vunpack.c.l.b16 %v264
        %v280 = vpack.c.b16 %v277, %v276
        %v281 = vpack.c.b16 %v279, %v278
        %v285 = vsel %vm227, %v260, 0
        %287 = vmatprep.subr.bf16.mxu0 0
        %288 = vmatpush1.bf16.msra.mxu0 0
        %289 = vmatprep.subr.bf16.mxu0 0
        %290 = vmatpush1.bf16.msra.mxu0 0
        %291 = vmatprep.subr.bf16.mxu0 0
        %292 = vmatpush1.bf16.msra.mxu0 0
        %293 = vmatprep.subr.bf16.mxu0 0
        %294 = vmatpush1.bf16.msra.mxu0 0
        %295 = vmatprep.subr.bf16.mxu0 0
        %296 = vmatpush1.bf16.msra.mxu0 0
        %297 = vmatprep.subr.bf16.mxu0 0
        %298 = vmatpush1.bf16.msra.mxu0 0
        %299 = vmatprep.subr.bf16.mxu0 0
        %300 = vmatpush1.bf16.msra.mxu0 %v281
        %301 = vmatprep.subr.bf16.mxu0 0
        %302 = vmatpush1.bf16.msra.mxu0 %v280
        %303 = vmatprep.subr.bf16.mxu0 0
        %304 = vmatpush2.bf16.msra.mxu0 0
        %305 = vmatprep.subr.bf16.mxu0 0
        %306 = vmatpush2.bf16.msra.mxu0 0
        %307 = vmatprep.subr.bf16.mxu0 0
        %308 = vmatpush2.bf16.msra.mxu0 0
        %309 = vmatprep.subr.bf16.mxu0 0
        %310 = vmatpush2.bf16.msra.mxu0 0
        %311 = vmatprep.subr.bf16.mxu0 0
        %312 = vmatpush2.bf16.msra.mxu0 0
        %313 = vmatprep.subr.bf16.mxu0 0
        %314 = vmatpush2.bf16.msra.mxu0 0
        %315 = vmatprep.subr.bf16.mxu0 0
        %316 = vmatpush2.bf16.msra.mxu0 0
        %317 = vmatprep.subr.bf16.mxu0 0
        %318 = vmatpush2.bf16.msra.mxu0 0
        %319 = vmatprep.mubr.bf16.mxu0 0
        %320 = vmatmul.mubr.bf16.gmra.mxu0 %v285
        %v321 = vpop.f32.mrf.mxu0
        %v322 = vadd.f32 %v270, %v321
        %v323 = vpop.f32.mrf.mxu0
        %v324 = vpop.f32.mrf.mxu0
        %v325 = vadd.f32 %v270, %v324
        %v326 = vpop.f32.mrf.mxu0
        %327 = vdwg.mxu0
        %v328 = vpack.c.bf16 %v325, %v322
        %v330 = vunpack.c.l.b16 %v328
        %v331 = vunpack.c.h.b16 %v328
        %v332 = vpack.c.b16 %v330, %v330
        %v333 = vpack.c.b16 %v331, %v331
        %vm336 = vcmask 519168
        %337 = vst.msk [vmem:[%s221] sm:$0xf] %vm336, %v332
        %338 = vst.msk [vmem:[%s221 + $0x4] sm:$0xf] %vm336, %v333
        %s339 = sand.u32 %s113, 1
        %s340 = scalar_lea.sflag [#allocation4], %s339
        %s341 = sand.u32 %s113, 1
        %s342 = smul.addr %s341, 8
        %s343 = scalar_lea.vmem [#allocation7], %s342
        // Predicated region
        $region41: #{tpu_custom_call.1} parent=31 // pred_check
          %p344 = pneg %p123
        $region42: #{tpu_custom_call.1} parent=31 // pred_check_branch
          %346 = sbr.rel (%p344) target = $region44
        $region43: #{tpu_custom_call.1} parent=31 // pred_region
          %s347 = smul.u32 2, %s26
          %s349 = ssub.s32 128, 128
          %350 = vsyncadd %s340, %s349
          %s351 = smul.addr %s25, 2
          %s352 = sadd.s32 %s347, %s351
          %s353 = smul.addr %s352, 64
          %s354 = scalar_lea.hbm %s3, %s353
          %s355 = sshll.u32 %s343, 4
          %s356 = int_to_ptr.vmem [resolvable:$true] %s355
          %361 = dma.vmem_to_hbm [thread:$0]  %s356, 128, %s354, %s340, 64, 64, 4
        $region44: #{tpu_custom_call.1} parent=31 // pred_fallthru
          _
      $region32: #{tpu_custom_call.1} parent=5 // pred_fallthru
        _
      %p362 = scmp.le.s32.totalorder 2, %s16
      // Predicated region
      $region45: #{tpu_custom_call.1} parent=5 // pred_check
        %p363 = pneg %p362
      $region46: #{tpu_custom_call.1} parent=5 // pred_check_branch
        %365 = sbr.rel (%p363) target = $region48
      $region47: #{tpu_custom_call.1} parent=5 // pred_region
        %s366 = ssub.s32 %s16, 2
        // Predicated region
        $region49: #{tpu_custom_call.1} parent=47 // pred_check
          %p367 = pneg %p129
        $region50: #{tpu_custom_call.1} parent=47 // pred_check_branch
          %369 = sbr.rel (%p367) target = $region52
        $region51: #{tpu_custom_call.1} parent=47 // pred_region
          %s370 = sand.u32 %s114, 1
          %s371 = scalar_lea.sflag [#allocation4], %s370
          %s372 = sand.u32 %s114, 1
          %s373 = smul.addr %s372, 8
          %s374 = scalar_lea.vmem [#allocation7], %s373
          %375 = dma.done %s371, 128
        $region52: #{tpu_custom_call.1} parent=47 // pred_fallthru
          _
      $region48: #{tpu_custom_call.1} parent=5 // pred_fallthru
        _
    $region6: #{tpu_custom_call.1} parent=1 // loop_footer
      %s20 = sadd.s32 1, %s16
    $region7: #{tpu_custom_call.1} parent=1 // loop_footer_branch
      %15 = sbr.rel target = $region3
    $region8: #{tpu_custom_call.1} parent=1 // loop_exit
      _
    %376 = vsyncpa [#allocation3], 1
    %s377 = scalar_lea.sflag [#allocation3], 1
    %378 = vsyncpa %s377, 1
    %379 = vsyncpa [#allocation6], 1
    %380 = vsyncpa [#allocation4], 1
    %s381 = scalar_lea.sflag [#allocation4], 1
    %382 = vsyncpa %s381, 1

</llo_original>
